<compile_context>
chip_gen: v7x
topology: tpu7x:2x2x1
jax: 0.10.0
libtpu: 0.0.40
codegen_flags: <defaults>
</compile_context>

<pallas_src>
import functools

import jax
import jax.numpy as jnp
from jax.experimental import pallas as pl
from jax.experimental.pallas import tpu as pltpu


def _round_up(x, m):
    return (x + m - 1) // m * m


def _linear_kernel_f32(x_ref, wt_ref, b_ref, o_ref):
    """f32-output path: accumulate directly into the resident output tile."""
    k = pl.program_id(2)

    @pl.when(k == 0)
    def _():
        # Fold the bias into the accumulator init (broadcast along M).
        o_ref[...] = jnp.broadcast_to(b_ref[...], o_ref.shape)

    o_ref[...] += jnp.dot(
        x_ref[...], wt_ref[...], preferred_element_type=jnp.float32
    )


def _linear_kernel_scratch(x_ref, wt_ref, b_ref, o_ref, acc_ref):
    """Generic path (narrow output dtype): f32 scratch accumulator."""
    k = pl.program_id(2)

    @pl.when(k == 0)
    def _():
        acc_ref[...] = jnp.broadcast_to(
            b_ref[...].astype(jnp.float32), acc_ref.shape
        )

    acc_ref[...] += jnp.dot(
        x_ref[...], wt_ref[...], preferred_element_type=jnp.float32
    )

    @pl.when(k == pl.num_programs(2) - 1)
    def _():
        o_ref[...] = acc_ref[...].astype(o_ref.dtype)


@functools.partial(jax.jit, static_argnames=("tm", "tn", "tk"))
def linear_pallas(x, wt, b, *, tm=256, tn=512, tk=512):
    """y = x @ wt + b via a tiled Pallas GEMM.

    Handles arbitrary (M, K, N): tiles are clamped to the rounded-up problem
    dims and inputs are zero-padded to tile multiples (padding is sliced off
    the output), so callers never need to shrink tiles for divisibility.
    """
    M, K = x.shape
    K2, N = wt.shape
    assert K == K2 and b.shape == (N,)

    out_dtype = x.dtype

    # Clamp tile sizes to the (aligned) problem dims; keep MXU/lane alignment.
    tm_ = min(tm, _round_up(M, 8))      # sublane multiple
    tn_ = min(tn, _round_up(N, 128))    # lane multiple (lane-dense output)
    tk_ = min(tk, _round_up(K, 128))    # lane multiple

    Mp, Np, Kp = _round_up(M, tm_), _round_up(N, tn_), _round_up(K, tk_)

    # Zero-padding is mathematically inert for the matmul; padded bias/output
    # columns are sliced away below.
    if (Mp, Kp) != (M, K):
        x = jnp.pad(x, ((0, Mp - M), (0, Kp - K)))
    if (Kp, Np) != (K, N):
        wt = jnp.pad(wt, ((0, Kp - K), (0, Np - N)))
    if Np != N:
        b = jnp.pad(b, (0, Np - N))
    b2d = b.reshape(1, Np)

    grid = (Mp // tm_, Np // tn_, Kp // tk_)

    elem = x.dtype.itemsize
    cost = pl.CostEstimate(
        flops=2 * Mp * Np * Kp,
        transcendentals=0,
        bytes_accessed=(Mp * Kp + Kp * Np + Np) * elem
        + Mp * Np * jnp.dtype(out_dtype).itemsize,
    )

    # f32 output: accumulate in the output tile itself (no scratch, no copy).
    # Narrower output dtype: keep an f32 scratch accumulator.
    if out_dtype == jnp.float32:
        kernel = _linear_kernel_f32
        scratch_shapes = []
        b2d = b2d.astype(jnp.float32)
    else:
        kernel = _linear_kernel_scratch
        scratch_shapes = [pltpu.VMEM((tm_, tn_), jnp.float32)]

    out = pl.pallas_call(
        kernel,
        out_shape=jax.ShapeDtypeStruct((Mp, Np), out_dtype),
        grid_spec=pltpu.PrefetchScalarGridSpec(
            num_scalar_prefetch=0,
            grid=grid,
            in_specs=[
                pl.BlockSpec((tm_, tk_), lambda i, j, k: (i, k)),  # x tile
                pl.BlockSpec((tk_, tn_), lambda i, j, k: (k, j)),  # Wt tile
                pl.BlockSpec((1, tn_), lambda i, j, k: (0, j)),    # bias tile
            ],
            out_specs=pl.BlockSpec((tm_, tn_), lambda i, j, k: (i, j)),
            scratch_shapes=scratch_shapes,
        ),
        compiler_params=pltpu.CompilerParams(
            # i/j parallel => megacore sharding on v7x; k (reduction) arbitrary.
            dimension_semantics=("parallel", "parallel", "arbitrary"),
        ),
        cost_estimate=cost,
    )(x, wt, b2d)

    if (Mp, Np) != (M, N):
        out = out[:M, :N]
    return out


class FullyConnectedLayer:
    """JAX/Pallas equivalent of the PyTorch FullyConnectedLayer module."""

    def __init__(self, in_features, out_features, key):
        kw, kb = jax.random.split(key)
        # Mirror nn.Linear's U(-1/sqrt(in), 1/sqrt(in)) init.
        bound = 1.0 / jnp.sqrt(jnp.float32(in_features))
        # PyTorch weight shape is (out_features, in_features); store transposed.
        w = jax.random.uniform(
            kw, (out_features, in_features), jnp.float32, -bound, bound
        )
        self.wt = jnp.transpose(w)  # (in_features, out_features)
        self.b = jax.random.uniform(
            kb, (out_features,), jnp.float32, -bound, bound
        )
        # Note: keeping f32 to exactly match nn.Linear float32 numerics;
        # callers wanting v6e/v7x bf16 MXU rates can cast x / wt to bfloat16
        # before calling linear_pallas (accumulation stays f32 via the
        # scratch-accumulator path).

    def __call__(self, x):
        return linear_pallas(x, self.wt, self.b)


if __name__ == "__main__":
    key = jax.random.PRNGKey(0)
    k_in, k_mod, k_in2, k_mod2 = jax.random.split(key, 4)

    # Small demo shapes (ragged vs. tile sizes -> exercises the padding path).
    batch, in_features, out_features = 2, 32, 64
    x = jax.random.normal(k_in, (batch, in_features), jnp.float32)
    layer = FullyConnectedLayer(in_features, out_features, k_mod)
    y = jax.block_until_ready(layer(x))

    y_ref = x @ layer.wt + layer.b
    assert y.shape == (batch, out_features)
    assert jnp.allclose(y, y_ref, atol=1e-4, rtol=1e-4)

    # Second check: multi-tile grid path (non-multiples of the default tiles,
    # multi-step K reduction accumulating in the resident output tile).
    batch2, in2, out2 = 300, 640, 384
    x2 = jax.random.normal(k_in2, (batch2, in2), jnp.float32)
    layer2 = FullyConnectedLayer(in2, out2, k_mod2)
    y2 = jax.block_until_ready(layer2(x2))
    y2_ref = x2 @ layer2.wt + layer2.b
    assert y2.shape == (batch2, out2)
    assert jnp.allclose(y2, y2_ref, atol=1e-3, rtol=1e-3)

    print("KERNEL_OK")
</pallas_src>

<mosaic_0001>
module attributes {stable_mosaic.version = 11 : i64} {
  func.func @_linear_kernel_f32(%arg0: i32, %arg1: i32, %arg2: i32, %arg3: memref<8x128xf32, #tpu.memory_space<vmem>>, %arg4: memref<128x128xf32, #tpu.memory_space<vmem>>, %arg5: memref<1x128xf32, #tpu.memory_space<vmem>>, %arg6: memref<8x128xf32, #tpu.memory_space<vmem>>) attributes {dimension_semantics = [#tpu.dimension_semantics<parallel>, #tpu.dimension_semantics<parallel>, #tpu.dimension_semantics<arbitrary>], iteration_bounds = array<i64: 1, 1, 1>, scalar_prefetch = 0 : i64, scratch_operands = 0 : i64, tpu.core_type = #tpu.core_type<tc>, window_params = [{transform_indices = @transform_0, window_bounds = array<i64: 8, 128>}, {transform_indices = @transform_1, window_bounds = array<i64: 128, 128>}, {transform_indices = @transform_2, window_bounds = array<i64: 1, 128>}, {transform_indices = @transform_3, window_bounds = array<i64: 8, 128>}]} {
    %c0_i32 = arith.constant 0 : i32
    %0 = arith.cmpi eq, %arg2, %c0_i32 : i32
    %1 = arith.extui %0 : i1 to i32
    %c0_i32_0 = arith.constant 0 : i32
    %2 = arith.cmpi ne, %1, %c0_i32_0 : i32
    scf.if %2 {
      %c0_8 = arith.constant 0 : index
      %c0_9 = arith.constant 0 : index
      %9 = vector.load %arg5[%c0_8, %c0_9] : memref<1x128xf32, #tpu.memory_space<vmem>>, vector<1x128xf32>
      %10 = vector.shape_cast %9 : vector<1x128xf32> to vector<1x128xf32>
      %11 = vector.broadcast %10 : vector<1x128xf32> to vector<8x128xf32>
      %c0_10 = arith.constant 0 : index
      %c0_11 = arith.constant 0 : index
      %12 = vector.load %arg6[%c0_10, %c0_11] : memref<8x128xf32, #tpu.memory_space<vmem>>, vector<8x128xf32>
      tpu.vector_store %arg6[%c0_10, %c0_11], %11 {strides = array<i32>} : memref<8x128xf32, #tpu.memory_space<vmem>>, vector<8x128xf32>,
    } else {
    }
    %c0 = arith.constant 0 : index
    %c0_1 = arith.constant 0 : index
    %3 = vector.load %arg6[%c0, %c0_1] : memref<8x128xf32, #tpu.memory_space<vmem>>, vector<8x128xf32>
    %c0_2 = arith.constant 0 : index
    %c0_3 = arith.constant 0 : index
    %4 = vector.load %arg3[%c0_2, %c0_3] : memref<8x128xf32, #tpu.memory_space<vmem>>, vector<8x128xf32>
    %c0_4 = arith.constant 0 : index
    %c0_5 = arith.constant 0 : index
    %5 = vector.load %arg4[%c0_4, %c0_5] : memref<128x128xf32, #tpu.memory_space<vmem>>, vector<128x128xf32>
    %cst = arith.constant dense<0.000000e+00> : vector<8x128xf32>
    %6 = tpu.matmul %4, %5, %cst {dimension_numbers = #tpu.dot_dimension_numbers<[1], [0], [0], [1], [0, 0, 1, 1], [], []>} : vector<8x128xf32>, vector<128x128xf32>, vector<8x128xf32> -> vector<8x128xf32>
    %7 = arith.addf %3, %6 : vector<8x128xf32>
    %c0_6 = arith.constant 0 : index
    %c0_7 = arith.constant 0 : index
    %8 = vector.load %arg6[%c0_6, %c0_7] : memref<8x128xf32, #tpu.memory_space<vmem>>, vector<8x128xf32>
    tpu.vector_store %arg6[%c0_6, %c0_7], %7 {strides = array<i32>} : memref<8x128xf32, #tpu.memory_space<vmem>>, vector<8x128xf32>,
    return
  }
  func.func @transform_0(%arg0: i32, %arg1: i32, %arg2: i32) -> (i32, i32) {
    %c0_i32 = arith.constant 0 : i32
    return %arg0, %arg2 : i32, i32
  }
  func.func @transform_1(%arg0: i32, %arg1: i32, %arg2: i32) -> (i32, i32) {
    %c0_i32 = arith.constant 0 : i32
    return %arg2, %arg1 : i32, i32
  }
  func.func @transform_2(%arg0: i32, %arg1: i32, %arg2: i32) -> (i32, i32) {
    %c0_i32 = arith.constant 0 : i32
    %c0_i32_0 = arith.constant 0 : i32
    return %c0_i32, %arg1 : i32, i32
  }
  func.func @transform_3(%arg0: i32, %arg1: i32, %arg2: i32) -> (i32, i32) {
    %c0_i32 = arith.constant 0 : i32
    return %arg0, %arg1 : i32, i32
  }
}

</mosaic_0001>

<llo_original>
// kernel: linear_pallas.1
$region0: #{linear_pallas.1}
  #allocation0 [shape = 'u32[]', space=smem, size = 0x4, offset = 0x4, fixed_abs, tag = 'smem constant byte address 0x4 - core index']
  #allocation1 [shape = 'u32[144,128]{1,0:T(1,128)}', space=vmem, size = 0x12000, scoped, tag = 'internal scratch']
  %s0 = inlined_call_operand.vmem [shape: f32[8,128], index: 0, kind: input, shape index: {}]
  %s1 = inlined_call_operand.vmem [shape: f32[128,128], index: 1, kind: input, shape index: {}]
  %s2 = inlined_call_operand.vmem [shape: f32[1,128], index: 2, kind: input, shape index: {}]
  %s3 = inlined_call_operand.vmem [shape: f32[8,128], index: 3, kind: output, shape index: {}]
  %s4 = sld [smem:[#allocation0]]
  $region26: #{linear_pallas.1} parent=0
    _
  %s6 = ssub.s32 1, %s4
  %s7 = scalar_select 0, %s6, %s4
  // Predicated region
  $region2: #{linear_pallas.1} parent=0 // pred_check
    _
  $region3: #{linear_pallas.1} parent=0 // pred_check_branch
    %9 = sbr.rel (0) target = $region5
  $region4: #{linear_pallas.1} parent=0 // pred_region
    _
  $region5: #{linear_pallas.1} parent=0 // pred_fallthru
    _
  // Predicated region
  $region6: #{linear_pallas.1} parent=0 // pred_check
    _
  $region7: #{linear_pallas.1} parent=0 // pred_check_branch
    %11 = sbr.rel (0) target = $region9
  $region8: #{linear_pallas.1} parent=0 // pred_region
    _
  $region9: #{linear_pallas.1} parent=0 // pred_fallthru
    _
  // Predicated region
  $region10: #{linear_pallas.1} parent=0 // pred_check
    _
  $region11: #{linear_pallas.1} parent=0 // pred_check_branch
    %13 = sbr.rel (0) target = $region13
  $region12: #{linear_pallas.1} parent=0 // pred_region
    _
  $region13: #{linear_pallas.1} parent=0 // pred_fallthru
    _
  %p14 = scmp.eq.s32.totalorder 0, 0
  // Predicated region
  $region14: #{linear_pallas.1} parent=0 // pred_check
    %p15 = pneg %p14
  $region15: #{linear_pallas.1} parent=0 // pred_check_branch
    %17 = sbr.rel (%p15) target = $region17
  $region16: #{linear_pallas.1} parent=0 // pred_region
    %v18 = vld [vmem:[%s2] sm:$0x1]
    %v20 = vlaneseq
    %v21 = vshrl.u32 %v20, 7
    %v22 = vsub.s32 0, %v21
    %v23 = vrot.slane %v18, %v22
    %25 = vst [vmem:[%s3] sm:$0xff] %v23
  $region17: #{linear_pallas.1} parent=0 // pred_fallthru
    _
  %v26 = vld [vmem:[%s3] sm:$0xff]
  %v27 = vld [vmem:[%s0] sm:$0xff]
  %v28 = vld [vmem:[%s1] sm:$0xff]
  %v29 = vld [vmem:[%s1 + $0x8] sm:$0xff]
  %v30 = vld [vmem:[%s1 + $0x10] sm:$0xff]
  %v31 = vld [vmem:[%s1 + $0x18] sm:$0xff]
  %v32 = vld [vmem:[%s1 + $0x20] sm:$0xff]
  %v33 = vld [vmem:[%s1 + $0x28] sm:$0xff]
  %v34 = vld [vmem:[%s1 + $0x30] sm:$0xff]
  %v35 = vld [vmem:[%s1 + $0x38] sm:$0xff]
  %v36 = vld [vmem:[%s1 + $0x40] sm:$0xff]
  %v37 = vld [vmem:[%s1 + $0x48] sm:$0xff]
  %v38 = vld [vmem:[%s1 + $0x50] sm:$0xff]
  %v39 = vld [vmem:[%s1 + $0x58] sm:$0xff]
  %v40 = vld [vmem:[%s1 + $0x60] sm:$0xff]
  %v41 = vld [vmem:[%s1 + $0x68] sm:$0xff]
  %v42 = vld [vmem:[%s1 + $0x70] sm:$0xff]
  %v43 = vld [vmem:[%s1 + $0x78] sm:$0xff]
  %44 = vmatprep.subr.mxu0 0.0
  %45 = vmatpush1.msra.mxu0 %v28
  %46 = vmatprep.subr.mxu0 0.0
  %47 = vmatpush1.msra.mxu0 %v29
  %48 = vmatprep.subr.mxu0 0.0
  %49 = vmatpush1.msra.mxu0 %v30
  %50 = vmatprep.subr.mxu0 0.0
  %51 = vmatpush1.msra.mxu0 %v31
  %52 = vmatprep.subr.mxu0 0.0
  %53 = vmatpush1.msra.mxu0 %v32
  %54 = vmatprep.subr.mxu0 0.0
  %55 = vmatpush1.msra.mxu0 %v33
  %56 = vmatprep.subr.mxu0 0.0
  %57 = vmatpush1.msra.mxu0 %v34
  %58 = vmatprep.subr.mxu0 0.0
  %59 = vmatpush1.msra.mxu0 %v35
  %60 = vmatprep.subr.mxu0 0.0
  %61 = vmatpush1.msra.mxu0 %v36
  %62 = vmatprep.subr.mxu0 0.0
  %63 = vmatpush1.msra.mxu0 %v37
  %64 = vmatprep.subr.mxu0 0.0
  %65 = vmatpush1.msra.mxu0 %v38
  %66 = vmatprep.subr.mxu0 0.0
  %67 = vmatpush1.msra.mxu0 %v39
  %68 = vmatprep.subr.mxu0 0.0
  %69 = vmatpush1.msra.mxu0 %v40
  %70 = vmatprep.subr.mxu0 0.0
  %71 = vmatpush1.msra.mxu0 %v41
  %72 = vmatprep.subr.mxu0 0.0
  %73 = vmatpush1.msra.mxu0 %v42
  %74 = vmatprep.subr.mxu0 0.0
  %75 = vmatpush1.msra.mxu0 %v43
  %76 = vmatprep.subr.mxu0 0.0
  %77 = vmatpush1.msra.mxu0 0.0
  %78 = vmatprep.subr.mxu0 0.0
  %79 = vmatpush1.msra.mxu0 0.0
  %80 = vmatprep.subr.mxu0 0.0
  %81 = vmatpush1.msra.mxu0 0.0
  %82 = vmatprep.subr.mxu0 0.0
  %83 = vmatpush1.msra.mxu0 0.0
  %84 = vmatprep.subr.mxu0 0.0
  %85 = vmatpush1.msra.mxu0 0.0
  %86 = vmatprep.subr.mxu0 0.0
  %87 = vmatpush1.msra.mxu0 0.0
  %88 = vmatprep.subr.mxu0 0.0
  %89 = vmatpush1.msra.mxu0 0.0
  %90 = vmatprep.subr.mxu0 0.0
  %91 = vmatpush1.msra.mxu0 0.0
  %92 = vmatprep.subr.mxu0 0.0
  %93 = vmatpush1.msra.mxu0 0.0
  %94 = vmatprep.subr.mxu0 0.0
  %95 = vmatpush1.msra.mxu0 0.0
  %96 = vmatprep.subr.mxu0 0.0
  %97 = vmatpush1.msra.mxu0 0.0
  %98 = vmatprep.subr.mxu0 0.0
  %99 = vmatpush1.msra.mxu0 0.0
  %100 = vmatprep.subr.mxu0 0.0
  %101 = vmatpush1.msra.mxu0 0.0
  %102 = vmatprep.subr.mxu0 0.0
  %103 = vmatpush1.msra.mxu0 0.0
  %104 = vmatprep.subr.mxu0 0.0
  %105 = vmatpush1.msra.mxu0 0.0
  %106 = vmatprep.subr.mxu0 0.0
  %107 = vmatpush1.msra.mxu0 0.0
  %108 = vmatprep.mubr.f32.mxu0 0.0
  %109 = vmatmul.mubr.f32.gmra.mrb[0].mxu0 %v27
  %v110 = vpop.f32.mrb[0].mxu0
  %v111 = vadd.f32 0.0, %v110
  %v112 = vpop.f32.mrb[0].mxu0
  %113 = vdwg.mxu0
  %v114 = vadd.f32 %v26, %v111
  %115 = vst [vmem:[%s3] sm:$0xff] %v114
  // Predicated region
  $region18: #{linear_pallas.1} parent=0 // pred_check
    _
  $region19: #{linear_pallas.1} parent=0 // pred_check_branch
    %117 = sbr.rel (0) target = $region21
  $region20: #{linear_pallas.1} parent=0 // pred_region
    _
  $region21: #{linear_pallas.1} parent=0 // pred_fallthru
    _
  // Predicated region
  $region22: #{linear_pallas.1} parent=0 // pred_check
    _
  $region23: #{linear_pallas.1} parent=0 // pred_check_branch
    %119 = sbr.rel (0) target = $region25
  $region24: #{linear_pallas.1} parent=0 // pred_region
    _
  $region25: #{linear_pallas.1} parent=0 // pred_fallthru
    _

</llo_original>
